<compile_context>
chip_gen: v6e
topology: v6e:2x2x1
jax: 0.10.0
libtpu: 0.0.40
codegen_flags: <defaults>
</compile_context>

<pallas_src>
import functools

import jax
import jax.numpy as jnp
from jax.experimental import pallas as pl
from jax.experimental.pallas import tpu as pltpu


def next_power_of2(x: int) -> int:
    """Smallest power of two >= x (matches hannah's helper for positive ints)."""
    return 1 if x <= 0 else 1 << (int(x) - 1).bit_length()


def _round_up(x: int, m: int) -> int:
    return ((x + m - 1) // m) * m


def _default_block_bytes() -> int:
    """Per-generation default input-block budget (smaller on v7x's 64 MiB VMEM)."""
    vmem = 128 * 1024 * 1024
    try:
        info = pltpu.get_tpu_info()
        vmem = int(getattr(info, "vmem_capacity_bytes", vmem))
    except Exception:
        pass
    return 2 * 1024 * 1024 if vmem <= 64 * 1024 * 1024 else 4 * 1024 * 1024


# ---------------------------------------------------------------------------
# Kernels
# ---------------------------------------------------------------------------

def _gap_kernel_single(x_ref, o_ref, *, inv_divisor):
    """Whole H*W in one block: reduce and write the output directly."""
    x = x_ref[...].astype(jnp.float32)
    o_ref[...] = (jnp.sum(x, axis=-1, keepdims=True) * inv_divisor).astype(o_ref.dtype)


def _gap_kernel_tiled(x_ref, o_ref, acc_ref, *, inv_divisor, hw_tile, tail_cols):
    """H*W split across grid axis 1.

    x_ref:  (tile_rows, hw_tile)   input block (hw_tile is a multiple of 128)
    o_ref:  (tile_rows, 1)         output block (resident across k)
    acc_ref:(tile_rows, 128) f32   lane-dense accumulator scratch
    """
    k = pl.program_id(1)
    last = pl.num_programs(1) - 1

    @pl.when(k == 0)
    def _init():
        acc_ref[...] = jnp.zeros_like(acc_ref)

    def accumulate(valid_cols):
        # Static-slice chunked adds: pure vld + VPU f32 add in the hot loop.
        acc = acc_ref[...]
        full = valid_cols // 128
        rem = valid_cols % 128
        for c in range(full):
            acc = acc + x_ref[:, c * 128:(c + 1) * 128].astype(jnp.float32)
        if rem:
            xc = x_ref[:, full * 128:(full + 1) * 128].astype(jnp.float32)
            lane = jax.lax.broadcasted_iota(jnp.int32, xc.shape, 1)
            acc = acc + jnp.where(lane < rem, xc, 0.0)
        acc_ref[...] = acc

    if tail_cols == 0:
        # No padded tail: every step runs the unmasked hot loop.
        accumulate(hw_tile)
    else:
        @pl.when(k != last)
        def _hot():
            accumulate(hw_tile)

        @pl.when(k == last)
        def _tail():
            # Only the last hw block is padded past H*W; mask is static here.
            accumulate(tail_cols)

    @pl.when(k == last)
    def _finalize():
        o_ref[...] = (jnp.sum(acc_ref[...], axis=-1, keepdims=True)
                      * inv_divisor).astype(o_ref.dtype)


# ---------------------------------------------------------------------------
# Tiling heuristics
# ---------------------------------------------------------------------------

_MAX_HW_TILE = 8 * 1024     # bounds unrolled chunk count (<= 64 chunks)
_MAX_TILE_ROWS = 2048


def _choose_tiles(rows, hw, itemsize, sublane, target_block_bytes):
    """Pick (tile_rows, hw_tile) using lane-padded VMEM footprints."""
    hw_padded = _round_up(hw, 128)
    rows_padded = _round_up(rows, sublane)

    if sublane * hw_padded * itemsize <= target_block_bytes:
        hw_tile = hw                                    # full reduction axis
        lane_bytes = hw_padded * itemsize
    else:
        hw_tile = (target_block_bytes // (sublane * itemsize)) // 128 * 128
        hw_tile = max(128, min(hw_tile, _MAX_HW_TILE))
        if hw_tile >= hw:
            hw_tile = hw
            lane_bytes = hw_padded * itemsize
        else:
            lane_bytes = hw_tile * itemsize             # already 128-multiple

    # Row tile: largest sublane multiple under budget, capped for pipelining
    # and so the "parallel" row axis has >= ~4 blocks (v7x two-TC sharding).
    tile_rows = max(sublane, (target_block_bytes // lane_bytes) // sublane * sublane)
    tile_rows = min(tile_rows, _MAX_TILE_ROWS)
    tile_rows = min(tile_rows, max(sublane, _round_up(-(-rows // 4), sublane)))
    tile_rows = min(tile_rows, rows_padded)
    if rows <= sublane:
        tile_rows = rows                                # full extent for tiny inputs
    return tile_rows, hw_tile


# ---------------------------------------------------------------------------
# Public entry point
# ---------------------------------------------------------------------------

def approximate_global_avg_pool2d(x, size, *, target_block_bytes=None):
    """Pallas implementation of ApproximateGlobalAveragePooling2D.forward.

    Args:
      x: (N, C, H, W) array.
      size: the `size` constructor argument (divisor = next_power_of2(size)).
      target_block_bytes: approximate per-input-block VMEM budget
        (default is picked per TPU generation).
    Returns:
      (N, C, 1, 1) array of the same dtype as x.
    """
    N, C, H, W = x.shape
    divisor = next_power_of2(size)
    inv_divisor = 1.0 / divisor            # power of two -> exact

    rows = N * C
    hw = H * W
    itemsize = jnp.dtype(x.dtype).itemsize
    sublane = max(8, 32 // itemsize)       # 8 (f32) / 16 (bf16) / 32 (int8/fp8)

    if target_block_bytes is None:
        target_block_bytes = _default_block_bytes()

    # Glue: flatten (N, C, H, W) -> (rows, H*W); the reduction itself is in-kernel.
    x2 = x.reshape(rows, hw)

    tile_rows, hw_tile = _choose_tiles(rows, hw, itemsize, sublane, target_block_bytes)
    row_blocks = pl.cdiv(rows, tile_rows)

    # Padded VMEM footprints (last dim rounds up to 128 lanes).
    in_block_bytes = tile_rows * _round_up(hw_tile, 128) * itemsize
    out_block_bytes = tile_rows * 128 * itemsize

    cost = pl.CostEstimate(
        flops=rows * hw,
        transcendentals=0,
        bytes_accessed=rows * hw * itemsize + rows * itemsize,
    )

    if hw_tile >= hw:
        # --- single hw block per row tile: no accumulator, direct write ---
        kernel = functools.partial(_gap_kernel_single, inv_divisor=inv_divisor)
        vmem_limit = int(2 * in_block_bytes + 2 * out_block_bytes + (2 << 20))
        out = pl.pallas_call(
            kernel,
            out_shape=jax.ShapeDtypeStruct((rows, 1), x.dtype),
            grid_spec=pltpu.PrefetchScalarGridSpec(
                num_scalar_prefetch=0,
                grid=(row_blocks,),
                in_specs=[pl.BlockSpec((tile_rows, hw), lambda i: (i, 0))],
                out_specs=pl.BlockSpec((tile_rows, 1), lambda i: (i, 0)),
            ),
            compiler_params=pltpu.CompilerParams(
                dimension_semantics=("parallel",),
                vmem_limit_bytes=vmem_limit,
            ),
            cost_estimate=cost,
        )(x2)
    else:
        # --- hw axis tiled: lane-dense f32 accumulator, finalize on last k ---
        hw_blocks = pl.cdiv(hw, hw_tile)
        tail_cols = hw - (hw_blocks - 1) * hw_tile
        if tail_cols == hw_tile:
            tail_cols = 0                      # evenly divides: no masking anywhere
        kernel = functools.partial(
            _gap_kernel_tiled,
            inv_divisor=inv_divisor,
            hw_tile=hw_tile,
            tail_cols=tail_cols,
        )
        acc_bytes = tile_rows * 128 * 4
        vmem_limit = int(2 * in_block_bytes + 2 * out_block_bytes
                         + acc_bytes + (2 << 20))
        out = pl.pallas_call(
            kernel,
            out_shape=jax.ShapeDtypeStruct((rows, 1), x.dtype),
            grid_spec=pltpu.PrefetchScalarGridSpec(
                num_scalar_prefetch=0,
                grid=(row_blocks, hw_blocks),
                in_specs=[pl.BlockSpec((tile_rows, hw_tile), lambda i, k: (i, k))],
                out_specs=pl.BlockSpec((tile_rows, 1), lambda i, k: (i, 0)),
                scratch_shapes=[pltpu.VMEM((tile_rows, 128), jnp.float32)],
            ),
            compiler_params=pltpu.CompilerParams(
                dimension_semantics=("parallel", "arbitrary"),
                vmem_limit_bytes=vmem_limit,
            ),
            cost_estimate=cost,
        )(x2)

    # TODO(synk): qconfig / activation_post_process (fake-quant observer) has no
    # Pallas equivalent here; module is constructed with qconfig=None.
    return out.reshape(N, C, 1, 1)


if __name__ == "__main__":
    key = jax.random.PRNGKey(0)

    # 1) Small shape matching the module's intended use (single-block fast path).
    N, C, H, W = 2, 4, 16, 16
    x = jax.random.normal(key, (N, C, H, W), dtype=jnp.float32)
    size = H * W  # module is built with size = number of pooled spatial elems

    y = approximate_global_avg_pool2d(x, size)
    y = jax.block_until_ready(y)

    ref = jnp.sum(x, axis=(2, 3), keepdims=True) / next_power_of2(size)
    assert y.shape == (N, C, 1, 1)
    assert y.dtype == x.dtype
    assert jnp.allclose(y, ref, atol=1e-5, rtol=1e-5)

    # 2) Force reduction-axis tiling (small VMEM budget) to exercise the
    #    lane-dense accumulator + gated tail-masking path on a
    #    non-128-divisible H*W.
    key2 = jax.random.PRNGKey(0)
    N2, C2, H2, W2 = 2, 16, 56, 56
    x2 = jax.random.normal(key2, (N2, C2, H2, W2), dtype=jnp.float32)
    size2 = H2 * W2
    y2 = approximate_global_avg_pool2d(x2, size2, target_block_bytes=64 * 1024)
    y2 = jax.block_until_ready(y2)
    ref2 = jnp.sum(x2, axis=(2, 3), keepdims=True) / next_power_of2(size2)
    assert jnp.allclose(y2, ref2, atol=1e-4, rtol=1e-5)

    # 3) bf16 input: exercises the 16-sublane row rounding and <128-lane
    #    output padding (single-block path).
    key3 = jax.random.PRNGKey(0)
    N3, C3, H3, W3 = 2, 16, 8, 8
    x3 = jax.random.normal(key3, (N3, C3, H3, W3), dtype=jnp.float32).astype(jnp.bfloat16)
    size3 = H3 * W3
    y3 = approximate_global_avg_pool2d(x3, size3)
    y3 = jax.block_until_ready(y3)
    ref3 = (jnp.sum(x3.astype(jnp.float32), axis=(2, 3), keepdims=True)
            / next_power_of2(size3)).astype(jnp.bfloat16)
    assert y3.dtype == jnp.bfloat16
    assert jnp.allclose(y3.astype(jnp.float32), ref3.astype(jnp.float32),
                        atol=1e-2, rtol=1e-2)

    print("KERNEL_OK")
</pallas_src>

<mosaic_0001>
module attributes {stable_mosaic.version = 11 : i64} {
  func.func @_gap_kernel_single(%arg0: i32, %arg1: memref<8x256xf32, #tpu.memory_space<vmem>>, %arg2: memref<8x1xf32, #tpu.memory_space<vmem>>) attributes {dimension_semantics = [#tpu.dimension_semantics<parallel>], iteration_bounds = array<i64: 1>, scalar_prefetch = 0 : i64, scratch_operands = 0 : i64, tpu.core_type = #tpu.core_type<tc>, window_params = [{transform_indices = @transform_0, window_bounds = array<i64: 8, 256>}, {transform_indices = @transform_1, window_bounds = array<i64: 8, 1>}]} {
    %c0 = arith.constant 0 : index
    %c0_0 = arith.constant 0 : index
    %0 = vector.load %arg1[%c0, %c0_0] : memref<8x256xf32, #tpu.memory_space<vmem>>, vector<8x256xf32>
    %cst = arith.constant dense<0.000000e+00> : vector<8xf32>
    %1 = vector.multi_reduction <add>, %0, %cst [1] : vector<8x256xf32> to vector<8xf32>
    %2 = vector.shape_cast %1 : vector<8xf32> to vector<8x1xf32>
    %cst_1 = arith.constant 3.906250e-03 : f32
    %3 = vector.broadcast %cst_1 : f32 to vector<8x1xf32>
    %4 = arith.mulf %2, %3 : vector<8x1xf32>
    %c0_2 = arith.constant 0 : index
    %c0_3 = arith.constant 0 : index
    %5 = vector.load %arg2[%c0_2, %c0_3] : memref<8x1xf32, #tpu.memory_space<vmem>>, vector<8x1xf32>
    tpu.vector_store %arg2[%c0_2, %c0_3], %4 {strides = array<i32>} : memref<8x1xf32, #tpu.memory_space<vmem>>, vector<8x1xf32>,
    return
  }
  func.func @transform_0(%arg0: i32) -> (i32, i32) {
    %c0_i32 = arith.constant 0 : i32
    %c0_i32_0 = arith.constant 0 : i32
    return %arg0, %c0_i32 : i32, i32
  }
  func.func @transform_1(%arg0: i32) -> (i32, i32) {
    %c0_i32 = arith.constant 0 : i32
    %c0_i32_0 = arith.constant 0 : i32
    return %arg0, %c0_i32 : i32, i32
  }
}

</mosaic_0001>

<llo_original>
// kernel: tpu_custom_call.1
$region0: #{tpu_custom_call.1}
  #allocation0 [shape = 'u32[]', space=smem, size = 0x4, offset = 0x4, fixed_abs, tag = 'smem constant byte address 0x4 - core index']
  #allocation1 [shape = 'u32[144,128]{1,0:T(1,128)}', space=vmem, size = 0x12000, scoped, tag = 'internal scratch']
  %s0 = inlined_call_operand.hbm [shape: f32[8,256], index: 0, kind: input, shape index: {}]
  %s1 = inlined_call_operand.vmem [shape: f32[8,1], index: 1, kind: output, shape index: {}]
  %s2 = sld [smem:[#allocation0]]
  $region18: #{tpu_custom_call.1} parent=0
    _
  %s4 = ssub.s32 1, %s2
  %s5 = scalar_select 0, %s4, %s2
  $region1: #{tpu_custom_call.1} parent=0
    #allocation2 [shape = 'u8[8192]{0}', space=vmem, size = 0x2000, scoped, tag = 'input window, operand 0, single buffered']
    #allocation3 [shape = 's32[1]{0}', space=sflag, size = 0x4, scoped, tag = 'scoped memory for tpu_custom_call.1']
    %6 = vsyncpa [#allocation3], 0
    // Predicated region
    $region2: #{tpu_custom_call.1} parent=1 // pred_check
      _
    $region3: #{tpu_custom_call.1} parent=1 // pred_check_branch
      %8 = sbr.rel (0) target = $region5
    $region4: #{tpu_custom_call.1} parent=1 // pred_region
      %s10 = ssub.s32 256, 256
      %11 = vsyncadd [#allocation3], %s10
      %s13 = sshll.u32 [#allocation2], 4
      %s14 = int_to_ptr.vmem [resolvable:$true] %s13
      %16 = dma.hbm_to_vmem [thread:$0]  %s0, 256, %s14, [#allocation3]
    $region5: #{tpu_custom_call.1} parent=1 // pred_fallthru
      _
    // Predicated region
    $region6: #{tpu_custom_call.1} parent=1 // pred_check
      _
    $region7: #{tpu_custom_call.1} parent=1 // pred_check_branch
      %18 = sbr.rel (0) target = $region9
    $region8: #{tpu_custom_call.1} parent=1 // pred_region
      %19 = dma.done [#allocation3], 256
    $region9: #{tpu_custom_call.1} parent=1 // pred_fallthru
      _
    %v20 = vld [vmem:[#allocation2] sm:$0xff]
    %v21 = vld [vmem:[#allocation2 + $0x8] sm:$0xff]
    %v22 = vadd.f32 %v20, %v21
    %23 = vadd.xlane.f32.xlu0 %v22
    %v24 = vpop.xlane.xlu0 %23
    %v25 = vmul.f32 %v24, 0.00390625
    %vm26 = vcmask 7168
    %27 = vst.msk [vmem:[%s1] sm:$0xff] %vm26, %v25
    // Predicated region
    $region10: #{tpu_custom_call.1} parent=1 // pred_check
      _
    $region11: #{tpu_custom_call.1} parent=1 // pred_check_branch
      %29 = sbr.rel (0) target = $region13
    $region12: #{tpu_custom_call.1} parent=1 // pred_region
      _
    $region13: #{tpu_custom_call.1} parent=1 // pred_fallthru
      _
    // Predicated region
    $region14: #{tpu_custom_call.1} parent=1 // pred_check
      _
    $region15: #{tpu_custom_call.1} parent=1 // pred_check_branch
      %31 = sbr.rel (0) target = $region17
    $region16: #{tpu_custom_call.1} parent=1 // pred_region
      _
    $region17: #{tpu_custom_call.1} parent=1 // pred_fallthru
      _
    %32 = vsyncpa [#allocation3], 1

</llo_original>
